<compile_context>
chip_gen: v6e
topology: v6e:2x2x1
jax: 0.10.0
libtpu: 0.0.40
codegen_flags: <defaults>
</compile_context>

<pallas_src>
import jax
import jax.numpy as jnp
from jax.experimental import pallas as pl
from jax.experimental.pallas import tpu as pltpu

_LANE = 128
_SUBLANE = 8


def _make_l3_kernel(t0: int, cols: int, rows: int, ragged: bool):
    """Builds the reduction kernel closed over static tiling constants."""

    def kernel(x_ref, o_ref, acc_ref):
        i = pl.program_id(0)

        @pl.when(i == 0)
        def _init():
            acc_ref[...] = jnp.zeros_like(acc_ref)

        x = x_ref[...]                      # (t0, cols) f32 block in VMEM
        cubed = x * x * jnp.abs(x)          # |x|^3 via 3 VALU ops (no pow/EUP)

        if ragged:
            # Last block along the row axis can run past the true row count;
            # its contents are undefined -> mask before accumulating.
            row_ids = jax.lax.broadcasted_iota(jnp.int32, (t0, cols), 0)
            valid = (i * t0 + row_ids) < rows
            cubed = jnp.where(valid, cubed, 0.0)

        # VPU-first: pure elementwise accumulate, no per-step XLU reductions.
        acc_ref[...] += cubed

        @pl.when(i == pl.num_programs(0) - 1)
        def _finalize():
            # Single cross-lane then cross-sublane collapse (XLU), done once.
            col = jnp.sum(acc_ref[...], axis=1, keepdims=True)   # (t0, 1)
            tot = jnp.sum(col, axis=0, keepdims=True)            # (1, 1)
            # One cube root on the final accumulator: s^(1/3) = exp(log(s)/3).
            o_ref[...] = jnp.exp(jnp.log(tot) * (1.0 / 3.0))

    return kernel


def reduce_l3_norm_all_dims(a: jax.Array,
                            target_block_bytes: int = 2 * 1024 * 1024) -> jax.Array:
    """L3 norm over all dims: (sum |a|^3)^(1/3). Returns a 0-d float32 array."""
    a = a.astype(jnp.float32)
    n = a.size

    # Free 2-D view (no pad, no data movement for a contiguous array):
    # lane-dense (N/128, 128) when possible, otherwise keep the contiguous
    # last dim on the lane axis and put all leading dims on rows.
    if n % _LANE == 0 and n > 0:
        cols = _LANE
    else:
        cols = a.shape[-1] if a.ndim >= 1 else 1
    rows = max(n // max(cols, 1), 1)
    a2 = a.reshape(rows, cols)

    # Row-chunk size: ~target_block_bytes of (lane-padded) VMEM per block,
    # multiple of 8 sublanes, or the full row count if it already fits.
    padded_cols = max(((cols + _LANE - 1) // _LANE) * _LANE, _LANE)
    bytes_per_row = padded_cols * 4
    t0 = max(target_block_bytes // bytes_per_row, _SUBLANE)
    t0 = (t0 // _SUBLANE) * _SUBLANE
    if t0 >= rows:
        t0 = rows                      # single block; "equal full dim" is legal
    num_blocks = -(-rows // t0)
    ragged = (rows % t0) != 0

    out = pl.pallas_call(
        _make_l3_kernel(t0, cols, rows, ragged),
        out_shape=jax.ShapeDtypeStruct((1, 1), jnp.float32),
        grid_spec=pltpu.PrefetchScalarGridSpec(
            num_scalar_prefetch=0,
            grid=(num_blocks,),
            in_specs=[pl.BlockSpec((t0, cols), lambda i: (i, 0))],
            out_specs=pl.BlockSpec((1, 1), lambda i: (0, 0)),
            scratch_shapes=[pltpu.VMEM((t0, cols), jnp.float32)],
        ),
        compiler_params=pltpu.CompilerParams(
            dimension_semantics=("arbitrary",)),   # reduction axis
    )(a2)

    # (1, 1) -> 0-d scalar, matching torch.linalg.vector_norm's result.
    return out[0, 0]


if __name__ == "__main__":
    key = jax.random.PRNGKey(0)
    k1, k2 = jax.random.split(key)

    # Canonical torch-mlir e2e shape: rank-3 float32 (3, 4, 5) -> single block.
    a_small = jax.random.normal(k1, (3, 4, 5), dtype=jnp.float32)
    out_small = jax.block_until_ready(reduce_l3_norm_all_dims(a_small))
    ref_small = jnp.sum(jnp.abs(a_small) ** 3) ** (1.0 / 3.0)
    assert out_small.shape == (), out_small.shape
    assert jnp.allclose(out_small, ref_small, rtol=1e-4, atol=1e-5), (out_small, ref_small)

    # Slightly larger ragged shape with a shrunken block target to exercise the
    # gridded accumulator + in-kernel tail-masking path (6 grid steps).
    a_big = jax.random.normal(k2, (17, 40, 23), dtype=jnp.float32)
    out_big = jax.block_until_ready(
        reduce_l3_norm_all_dims(a_big, target_block_bytes=64 * 1024))
    ref_big = jnp.sum(jnp.abs(a_big) ** 3) ** (1.0 / 3.0)
    assert out_big.shape == (), out_big.shape
    assert jnp.allclose(out_big, ref_big, rtol=1e-4, atol=1e-5), (out_big, ref_big)

    print("KERNEL_OK")
</pallas_src>

<mosaic_0001>
module attributes {stable_mosaic.version = 11 : i64} {
  func.func @kernel(%arg0: i32, %arg1: memref<12x5xf32, #tpu.memory_space<vmem>>, %arg2: memref<1x1xf32, #tpu.memory_space<vmem>>, %arg3: memref<12x5xf32, #tpu.memory_space<vmem>>) attributes {dimension_semantics = [#tpu.dimension_semantics<arbitrary>], iteration_bounds = array<i64: 1>, scalar_prefetch = 0 : i64, scratch_operands = 1 : i64, tpu.core_type = #tpu.core_type<tc>, window_params = [{transform_indices = @transform_0, window_bounds = array<i64: 12, 5>}, {pipeline_mode = #tpu.pipeline_mode<synchronous>, transform_indices = @transform_1, window_bounds = array<i64: 1, 1>}]} {
    %c0_i32 = arith.constant 0 : i32
    %0 = arith.cmpi eq, %arg0, %c0_i32 : i32
    %1 = arith.extui %0 : i1 to i32
    %c0_i32_0 = arith.constant 0 : i32
    %2 = arith.cmpi ne, %1, %c0_i32_0 : i32
    scf.if %2 {
      %cst = arith.constant 0.000000e+00 : f32
      %13 = vector.broadcast %cst : f32 to vector<12x5xf32>
      %c0_8 = arith.constant 0 : index
      %c0_9 = arith.constant 0 : index
      %14 = vector.load %arg3[%c0_8, %c0_9] : memref<12x5xf32, #tpu.memory_space<vmem>>, vector<12x5xf32>
      tpu.vector_store %arg3[%c0_8, %c0_9], %13 {strides = array<i32>} : memref<12x5xf32, #tpu.memory_space<vmem>>, vector<12x5xf32>,
    } else {
    }
    %c0 = arith.constant 0 : index
    %c0_1 = arith.constant 0 : index
    %3 = vector.load %arg1[%c0, %c0_1] : memref<12x5xf32, #tpu.memory_space<vmem>>, vector<12x5xf32>
    %4 = arith.mulf %3, %3 : vector<12x5xf32>
    %5 = math.absf %3 : vector<12x5xf32>
    %6 = arith.mulf %4, %5 : vector<12x5xf32>
    %c0_2 = arith.constant 0 : index
    %c0_3 = arith.constant 0 : index
    %7 = vector.load %arg3[%c0_2, %c0_3] : memref<12x5xf32, #tpu.memory_space<vmem>>, vector<12x5xf32>
    %8 = arith.addf %7, %6 : vector<12x5xf32>
    %c0_4 = arith.constant 0 : index
    %c0_5 = arith.constant 0 : index
    %9 = vector.load %arg3[%c0_4, %c0_5] : memref<12x5xf32, #tpu.memory_space<vmem>>, vector<12x5xf32>
    tpu.vector_store %arg3[%c0_4, %c0_5], %8 {strides = array<i32>} : memref<12x5xf32, #tpu.memory_space<vmem>>, vector<12x5xf32>,
    %c0_i32_6 = arith.constant 0 : i32
    %10 = arith.cmpi eq, %arg0, %c0_i32_6 : i32
    %11 = arith.extui %10 : i1 to i32
    %c0_i32_7 = arith.constant 0 : i32
    %12 = arith.cmpi ne, %11, %c0_i32_7 : i32
    scf.if %12 {
      %c0_8 = arith.constant 0 : index
      %c0_9 = arith.constant 0 : index
      %13 = vector.load %arg3[%c0_8, %c0_9] : memref<12x5xf32, #tpu.memory_space<vmem>>, vector<12x5xf32>
      %cst = arith.constant dense<0.000000e+00> : vector<12xf32>
      %14 = vector.multi_reduction <add>, %13, %cst [1] : vector<12x5xf32> to vector<12xf32>
      %15 = vector.shape_cast %14 : vector<12xf32> to vector<12x1xf32>
      %cst_10 = arith.constant dense<0.000000e+00> : vector<1xf32>
      %16 = vector.multi_reduction <add>, %15, %cst_10 [0] : vector<12x1xf32> to vector<1xf32>
      %17 = vector.shape_cast %16 : vector<1xf32> to vector<1x1xf32>
      %18 = math.log %17 : vector<1x1xf32>
      %cst_11 = arith.constant 0.333333343 : f32
      %19 = vector.broadcast %cst_11 : f32 to vector<1x1xf32>
      %20 = arith.mulf %18, %19 : vector<1x1xf32>
      %21 = math.exp %20 : vector<1x1xf32>
      %c0_12 = arith.constant 0 : index
      %c0_13 = arith.constant 0 : index
      %22 = vector.load %arg2[%c0_12, %c0_13] : memref<1x1xf32, #tpu.memory_space<vmem>>, vector<1x1xf32>
      tpu.vector_store %arg2[%c0_12, %c0_13], %21 {strides = array<i32>} : memref<1x1xf32, #tpu.memory_space<vmem>>, vector<1x1xf32>,
    } else {
    }
    return
  }
  func.func @transform_0(%arg0: i32) -> (i32, i32) {
    %c0_i32 = arith.constant 0 : i32
    %c0_i32_0 = arith.constant 0 : i32
    return %arg0, %c0_i32 : i32, i32
  }
  func.func @transform_1(%arg0: i32) -> (i32, i32) {
    %c0_i32 = arith.constant 0 : i32
    %c0_i32_0 = arith.constant 0 : i32
    %c0_i32_1 = arith.constant 0 : i32
    return %c0_i32, %c0_i32_0 : i32, i32
  }
}

</mosaic_0001>

<llo_original>
// kernel: tpu_custom_call.1
$region0: #{tpu_custom_call.1}
  #allocation0 [shape = 'u32[]', space=smem, size = 0x4, offset = 0x4, fixed_abs, tag = 'smem constant byte address 0x4 - core index']
  #allocation1 [shape = 'u32[144,128]{1,0:T(1,128)}', space=vmem, size = 0x12000, scoped, tag = 'internal scratch']
  #allocation2 [shape = 'f32[12,5]{1,0:T(8,128)}', space=vmem, size = 0x2000, scoped, tag = 'scratch operand']
  %s0 = inlined_call_operand.vmem [shape: f32[12,5], index: 0, kind: input, shape index: {}]
  %s1 = inlined_call_operand.hbm [shape: f32[1,1], index: 1, kind: output, shape index: {}]
  %s2 = sld [smem:[#allocation0]]
  $region22: #{tpu_custom_call.1} parent=0
    _
  %s4 = ssub.s32 1, %s2
  %s5 = scalar_select 0, %s4, %s2
  $region1: #{tpu_custom_call.1} parent=0
    #allocation3 [shape = 'u8[512]{0}', space=vmem, size = 0x400, scoped, tag = 'output window, operand 0, single buffered']
    #allocation4 [shape = 's32[1]{0}', space=sflag, size = 0x4, scoped, tag = 'scoped memory for tpu_custom_call.1']
    %6 = vsyncpa [#allocation4], 0
    // Predicated region
    $region2: #{tpu_custom_call.1} parent=1 // pred_check
      _
    $region3: #{tpu_custom_call.1} parent=1 // pred_check_branch
      %8 = sbr.rel (0) target = $region5
    $region4: #{tpu_custom_call.1} parent=1 // pred_region
      _
    $region5: #{tpu_custom_call.1} parent=1 // pred_fallthru
      _
    %p9 = scmp.eq.s32.totalorder 0, 0
    // Predicated region
    $region6: #{tpu_custom_call.1} parent=1 // pred_check
      %p10 = pneg %p9
    $region7: #{tpu_custom_call.1} parent=1 // pred_check_branch
      %12 = sbr.rel (%p10) target = $region9
    $region8: #{tpu_custom_call.1} parent=1 // pred_region
      %vm13 = vcmask 39936
      %14 = vst.msk [vmem:[#allocation2] sm:$0xff] %vm13, 0.0
      %vm15 = vcmask 35840
      %16 = vst.msk [vmem:[#allocation2 + $0x8] sm:$0xf] %vm15, 0.0
    $region9: #{tpu_custom_call.1} parent=1 // pred_fallthru
      _
    %v17 = vld [vmem:[%s0] sm:$0xff]
    %v18 = vld [vmem:[%s0 + $0x8] sm:$0xf]
    %v19 = vmul.f32 %v17, %v17
    %v20 = vmul.f32 %v18, %v18
    %v21 = vand.u32 2147483647, %v17
    %v22 = vand.u32 2147483647, %v18
    %v23 = vmul.f32 %v19, %v21
    %v24 = vmul.f32 %v20, %v22
    %v25 = vld [vmem:[#allocation2] sm:$0xff]
    %v26 = vld [vmem:[#allocation2 + $0x8] sm:$0xf]
    %v27 = vadd.f32 %v25, %v23
    %v28 = vadd.f32 %v26, %v24
    %vm29 = vcmask 39936
    %30 = vst.msk [vmem:[#allocation2] sm:$0xff] %vm29, %v27
    %vm31 = vcmask 35840
    %32 = vst.msk [vmem:[#allocation2 + $0x8] sm:$0xf] %vm31, %v28
    // Predicated region
    $region10: #{tpu_custom_call.1} parent=1 // pred_check
      %p33 = pneg %p9
    $region11: #{tpu_custom_call.1} parent=1 // pred_check_branch
      %35 = sbr.rel (%p33) target = $region13
    $region12: #{tpu_custom_call.1} parent=1 // pred_region
      %v36 = vld [vmem:[#allocation2] sm:$0xff]
      %v37 = vld [vmem:[#allocation2 + $0x8] sm:$0xf]
      %v38 = vsel %vm29, %v36, 0.0
      %39 = vadd.xlane.f32.xlu0 %v38
      %v40 = vpop.xlane.xlu0 %39
      %v41 = vsel %vm31, %v37, 0.0
      %42 = vadd.xlane.f32.xlu0 %v41
      %v43 = vpop.xlane.xlu0 %42
      %vm44 = vcmask 1043456
      %v45 = vsel %vm44, %v43, 0.0
      %v46 = vadd.f32 %v40, %v45
      %v47 = vrot.slane %v46, 4
      %v48 = vadd.f32 %v46, %v47
      %v49 = vrot.slane %v48, 2
      %v50 = vadd.f32 %v48, %v49
      %v51 = vrot.slane %v50, 1
      %v52 = vadd.f32 %v50, %v51
      %v53 = vlog2.pop %v52
      %v54 = vmul.f32 %v53, 0.6931472
      %v55 = vmul.f32 %v54, 0.33333334
      %v56 = vmul.f32 %v55, 1.442695
      %v57 = vpow.pop %v56
      %vm58 = vcmask 0
      %59 = vst.msk [vmem:[#allocation3] sm:$0x1] %vm58, %v57
    $region13: #{tpu_custom_call.1} parent=1 // pred_fallthru
      _
    // Predicated region
    $region14: #{tpu_custom_call.1} parent=1 // pred_check
      _
    $region15: #{tpu_custom_call.1} parent=1 // pred_check_branch
      %61 = sbr.rel (0) target = $region17
    $region16: #{tpu_custom_call.1} parent=1 // pred_region
      %s63 = ssub.s32 16, 16
      %64 = vsyncadd [#allocation4], %s63
      %s66 = sshll.u32 [#allocation3], 4
      %s67 = int_to_ptr.vmem [resolvable:$true] %s66
      %69 = dma.vmem_to_hbm [thread:$0]  %s67, 16, %s1, [#allocation4]
    $region17: #{tpu_custom_call.1} parent=1 // pred_fallthru
      _
    // Predicated region
    $region18: #{tpu_custom_call.1} parent=1 // pred_check
      _
    $region19: #{tpu_custom_call.1} parent=1 // pred_check_branch
      %71 = sbr.rel (0) target = $region21
    $region20: #{tpu_custom_call.1} parent=1 // pred_region
      %72 = dma.done [#allocation4], 16
    $region21: #{tpu_custom_call.1} parent=1 // pred_fallthru
      _
    %73 = vsyncpa [#allocation4], 1

</llo_original>
